<compile_context>
chip_gen: v5e
topology: v5e:2x2
jax: 0.10.0
libtpu: 0.0.40
codegen_flags: <defaults>
</compile_context>

<pallas_src>
import jax
import jax.numpy as jnp
from jax.experimental import pallas as pl
from jax.experimental.pallas import tpu as pltpu


# ----------------------------- kernel helpers -----------------------------

def _l2_normalize(x):
    # torch: x / (||x||_2 + 1e-30).  rsqrt(ss + 1e-30) is numerically
    # equivalent for non-degenerate rows and maps all-zero rows to 0 as well.
    ss = jnp.sum(x * x, axis=-1, keepdims=True)
    return x * jax.lax.rsqrt(ss + 1e-30)


def _row_nonzero_count(a):
    # torch: (matrix != 0).sum(-1, keepdim=True)
    return jnp.sum((a != 0).astype(jnp.float32), axis=-1, keepdims=True)


# ------------------------------- the kernel -------------------------------

def up2bottom_kernel(
    ft_ref,             # SMEM (1,) f32
    op_emb_ref,         # (B, N_op, D)  bf16
    all_word_ref,       # (B, L, D)     bf16
    node_hidden_ref,    # (B, D)        f32
    word_operator_ref,  # (B, L, N_op)  bf16
    word_word_ref,      # (B, L, L)     bf16  (already masked by word_exist_matrix)
    dep_bd_ref,         # (B, L, L)     bf16  block-diagonal depend_relation
    goal_vec_ref,       # (B, 1, L)     f32   (goal_word * word_exist_sequence)
    wo_ref, bo_ref,     # (D, H) bf16, (1, H) f32           o_w
    wks_ref, bks_ref,   # (D, 2H) bf16, (1, 2H) f32         [w_w_k | w_w_s]
    wu_ref, bu_ref,     # (3H, D) bf16, (1, D) f32          w_update
    wgf_ref, bg_ref,    # (D, 2D) bf16, (1, D) f32          [w_g | forget_gate(goal_w part)]
    wf2_ref, bf_ref,    # (D, D) bf16, (1, D) f32           forget_gate(node_hidden part)
    out_ref,            # (B, D) f32
):
    f32 = jnp.float32
    bf16 = jnp.bfloat16

    ft = ft_ref[0]

    B, N_op, D = op_emb_ref.shape
    L = all_word_ref.shape[1]
    H = wo_ref.shape[1]

    # ---- shared linear projections on batch-flattened slabs (one wide matmul each)
    op_flat = op_emb_ref[...].reshape(B * N_op, D)                    # bf16
    op_h = (jnp.dot(op_flat, wo_ref[...], preferred_element_type=f32)
            + bo_ref[...]).reshape(B, N_op, H)                        # f32

    aw_flat = all_word_ref[...].reshape(B * L, D)                     # bf16
    ks = (jnp.dot(aw_flat, wks_ref[...], preferred_element_type=f32)
          + bks_ref[...]).reshape(B, L, 2 * H)                        # f32
    wk_proj = ks[:, :, :H]
    ws_proj = ks[:, :, H:]

    # ---- word_o = L2-normalize(word_operator @ o_w(op_embedding))
    word_o = jnp.einsum('bln,bnh->blh', word_operator_ref[...],
                        op_h.astype(bf16), preferred_element_type=f32)
    word_o = _l2_normalize(word_o)

    # ---- word_w_k: row-normalized adjacency matmul (scale the result rows)
    ww = word_word_ref[...]
    word_w_k = jnp.einsum('blm,bmh->blh', ww, wk_proj.astype(bf16),
                          preferred_element_type=f32)
    word_w_k = word_w_k * (1.0 / (_row_nonzero_count(ww) + 1e-30))
    word_w_k = _l2_normalize(word_w_k)

    # ---- word_w_s: per-piece depend_relation matmuls == block-diagonal matmul
    dep = dep_bd_ref[...]
    word_w_s = jnp.einsum('blm,bmh->blh', dep, ws_proj.astype(bf16),
                          preferred_element_type=f32)
    word_w_s = word_w_s * (1.0 / (_row_nonzero_count(dep) + 1e-30))
    word_w_s = _l2_normalize(word_w_s)

    # ---- word_updated = relu(w_update(cat([word_o, word_w_k, word_w_s], -1)))
    neigh = jnp.concatenate([word_o, word_w_k, word_w_s], axis=-1)    # [B, L, 3H]
    neigh_flat = neigh.astype(bf16).reshape(B * L, 3 * H)
    word_updated = jnp.maximum(
        jnp.dot(neigh_flat, wu_ref[...], preferred_element_type=f32) + bu_ref[...],
        0.0).reshape(B, L, D)                                         # f32

    # ---- goal_w = normalize(goal_vec) @ word_updated  (scale result by 1/count)
    gv = goal_vec_ref[...]                                            # [B, 1, L] f32
    gv_cnt = jnp.sum((gv != 0).astype(f32), axis=-1)                  # [B, 1]
    goal_w = jnp.einsum('bql,bld->bqd', gv, word_updated,
                        preferred_element_type=f32).reshape(B, D)
    goal_w = goal_w * (1.0 / (gv_cnt + 1e-30))                        # [B, D]

    # ---- goal_updated = relu(w_g(goal_w)) ; forget = sigmoid(forget_gate([goal_w, nh]))
    gf = jnp.dot(goal_w.astype(bf16), wgf_ref[...],
                 preferred_element_type=f32)                          # [B, 2D]
    goal_updated = jnp.maximum(gf[:, :D] + bg_ref[...], 0.0)

    node_hidden = node_hidden_ref[...]                                # [B, D] f32
    f_pre = (gf[:, D:] + bf_ref[...]
             + jnp.dot(node_hidden.astype(bf16), wf2_ref[...],
                       preferred_element_type=f32))
    forget = jax.nn.sigmoid(f_pre)

    # ---- goal_next = clip(forget, min=ft) * node_hidden + (1 - forget) * goal_updated
    goal_next = jnp.maximum(forget, ft) * node_hidden + (1.0 - forget) * goal_updated
    out_ref[...] = goal_next.astype(out_ref.dtype)


# ------------------------------- wrapper ----------------------------------

def _block_diag_batched(mats):
    B = mats[0].shape[0]
    L = sum(m.shape[1] for m in mats)
    out = jnp.zeros((B, L, L), dtype=mats[0].dtype)
    off = 0
    for m in mats:
        li = m.shape[1]
        out = out.at[:, off:off + li, off:off + li].set(m)
        off += li
    return out


def up2bottom_forward(params, ft, input_embeddings, word_exist_matrix,
                      word_exist_sequence, graph_adjs, goal_word):
    word_outputs, node_hidden, op_embedding = input_embeddings
    word_operator, word_word, depend_relation = graph_adjs

    f32, bf16 = jnp.float32, jnp.bfloat16

    all_word = jnp.concatenate(word_outputs, axis=1)                  # [B, L, D]
    # block-diagonal built directly in bf16 (0/1 masks are exact in bf16)
    dep_bd = _block_diag_batched([d.astype(bf16) for d in depend_relation])
    ww_masked = (word_word * word_exist_matrix).astype(bf16)          # [B, L, L]
    goal_vec = (goal_word * word_exist_sequence)[:, None, :].astype(f32)

    B, L, D = all_word.shape
    H = params["W_o"].shape[1]

    # fuse shared-LHS weights once, outside the kernel
    W_ks = jnp.concatenate([params["W_k"], params["W_s"]], axis=1)    # [D, 2H]
    b_ks = jnp.concatenate([params["b_k"], params["b_s"]], axis=1)    # [1, 2H]
    W_u = jnp.concatenate([params["W_u1"], params["W_u2"], params["W_u3"]],
                          axis=0)                                     # [3H, D]
    W_gf = jnp.concatenate([params["W_g"], params["W_f1"]], axis=1)   # [D, 2D]

    vmem = pl.BlockSpec(memory_space=pltpu.MemorySpace.VMEM)
    smem = pl.BlockSpec(memory_space=pltpu.MemorySpace.SMEM)

    out = pl.pallas_call(
        up2bottom_kernel,
        out_shape=jax.ShapeDtypeStruct((B, D), f32),
        in_specs=[smem] + [vmem] * 17,
        out_specs=vmem,
        compiler_params=pltpu.CompilerParams(
            vmem_limit_bytes=32 * 1024 * 1024),
    )(
        jnp.asarray([ft], f32),
        op_embedding.astype(bf16),
        all_word.astype(bf16),
        node_hidden.astype(f32),
        word_operator.astype(bf16),
        ww_masked,
        dep_bd,
        goal_vec,
        params["W_o"].astype(bf16), params["b_o"].astype(f32),
        W_ks.astype(bf16), b_ks.astype(f32),
        W_u.astype(bf16), params["b_u"].astype(f32),
        W_gf.astype(bf16), params["b_g"].astype(f32),
        params["W_f2"].astype(bf16), params["b_f"].astype(f32),
    )
    return out   # [B, D]


# ------------------------------- main -------------------------------------

if __name__ == "__main__":
    key = jax.random.PRNGKey(0)
    B, D, H = 2, 32, 32           # input_dim = hidden_size = 32
    L1, L2 = 8, 8                 # two word_output pieces
    L = L1 + L2
    N_op = 8
    ft = 0.3

    ks = jax.random.split(key, 24)

    # deterministic synthetic parameters (stored as [in, out], JAX convention)
    s = 0.1
    params = {
        "W_o":  s * jax.random.normal(ks[0],  (D, H), jnp.float32),
        "b_o":  s * jax.random.normal(ks[1],  (1, H), jnp.float32),
        "W_k":  s * jax.random.normal(ks[2],  (D, H), jnp.float32),
        "b_k":  s * jax.random.normal(ks[3],  (1, H), jnp.float32),
        "W_s":  s * jax.random.normal(ks[4],  (D, H), jnp.float32),
        "b_s":  s * jax.random.normal(ks[5],  (1, H), jnp.float32),
        "W_u1": s * jax.random.normal(ks[6],  (H, D), jnp.float32),
        "W_u2": s * jax.random.normal(ks[7],  (H, D), jnp.float32),
        "W_u3": s * jax.random.normal(ks[8],  (H, D), jnp.float32),
        "b_u":  s * jax.random.normal(ks[9],  (1, D), jnp.float32),
        "W_g":  s * jax.random.normal(ks[10], (D, D), jnp.float32),
        "b_g":  s * jax.random.normal(ks[11], (1, D), jnp.float32),
        "W_f1": s * jax.random.normal(ks[12], (D, D), jnp.float32),
        "W_f2": s * jax.random.normal(ks[13], (D, D), jnp.float32),
        "b_f":  s * jax.random.normal(ks[14], (1, D), jnp.float32),
    }

    # synthetic inputs
    word_outputs = [
        jax.random.normal(ks[15], (B, L1, D), jnp.float32),
        jax.random.normal(ks[16], (B, L2, D), jnp.float32),
    ]
    node_hidden = jax.random.normal(ks[17], (B, D), jnp.float32)
    op_embedding = jax.random.normal(ks[18], (B, N_op, D), jnp.float32)

    word_operator = jax.random.bernoulli(ks[19], 0.4, (B, L, N_op)).astype(jnp.float32)
    word_word = jax.random.bernoulli(ks[20], 0.4, (B, L, L)).astype(jnp.float32)
    depend_relation = [
        jax.random.bernoulli(ks[21], 0.5, (B, L1, L1)).astype(jnp.float32),
        jax.random.bernoulli(ks[22], 0.5, (B, L2, L2)).astype(jnp.float32),
    ]
    word_exist_matrix = jnp.ones((B, L, L), jnp.float32)
    word_exist_sequence = jnp.ones((B, L), jnp.float32)
    goal_word = jax.random.bernoulli(ks[23], 0.6, (B, L)).astype(jnp.float32)

    out = up2bottom_forward(
        params, ft,
        (word_outputs, node_hidden, op_embedding),
        word_exist_matrix, word_exist_sequence,
        (word_operator, word_word, depend_relation),
        goal_word,
    )
    jax.block_until_ready(out)
    assert out.shape == (B, D) and out.dtype == jnp.float32
    print("KERNEL_OK")
</pallas_src>

<mosaic_0001>
module attributes {stable_mosaic.version = 11 : i64} {
  func.func @up2bottom_kernel(%arg0: memref<1xf32, #tpu.memory_space<smem>>, %arg1: memref<2x8x32xbf16, #tpu.memory_space<vmem>>, %arg2: memref<2x16x32xbf16, #tpu.memory_space<vmem>>, %arg3: memref<2x32xf32, #tpu.memory_space<vmem>>, %arg4: memref<2x16x8xbf16, #tpu.memory_space<vmem>>, %arg5: memref<2x16x16xbf16, #tpu.memory_space<vmem>>, %arg6: memref<2x16x16xbf16, #tpu.memory_space<vmem>>, %arg7: memref<2x1x16xf32, #tpu.memory_space<vmem>>, %arg8: memref<32x32xbf16, #tpu.memory_space<vmem>>, %arg9: memref<1x32xf32, #tpu.memory_space<vmem>>, %arg10: memref<32x64xbf16, #tpu.memory_space<vmem>>, %arg11: memref<1x64xf32, #tpu.memory_space<vmem>>, %arg12: memref<96x32xbf16, #tpu.memory_space<vmem>>, %arg13: memref<1x32xf32, #tpu.memory_space<vmem>>, %arg14: memref<32x64xbf16, #tpu.memory_space<vmem>>, %arg15: memref<1x32xf32, #tpu.memory_space<vmem>>, %arg16: memref<32x32xbf16, #tpu.memory_space<vmem>>, %arg17: memref<1x32xf32, #tpu.memory_space<vmem>>, %arg18: memref<2x32xf32, #tpu.memory_space<vmem>>) attributes {dimension_semantics = [], scalar_prefetch = 0 : i64, scratch_operands = 0 : i64, tpu.core_type = #tpu.core_type<tc>} {
    %c0 = arith.constant 0 : index
    %0 = memref.load %arg0[%c0] : memref<1xf32, #tpu.memory_space<smem>>
    %c0_0 = arith.constant 0 : index
    %c0_1 = arith.constant 0 : index
    %c0_2 = arith.constant 0 : index
    %1 = vector.load %arg1[%c0_0, %c0_1, %c0_2] : memref<2x8x32xbf16, #tpu.memory_space<vmem>>, vector<2x8x32xbf16>
    %2 = vector.shape_cast %1 : vector<2x8x32xbf16> to vector<16x32xbf16>
    %c0_3 = arith.constant 0 : index
    %c0_4 = arith.constant 0 : index
    %3 = vector.load %arg8[%c0_3, %c0_4] : memref<32x32xbf16, #tpu.memory_space<vmem>>, vector<32x32xbf16>
    %cst = arith.constant dense<0.000000e+00> : vector<16x32xf32>
    %4 = tpu.matmul %2, %3, %cst {dimension_numbers = #tpu.dot_dimension_numbers<[1], [0], [0], [1], [0, 0, 1, 1], [], []>} : vector<16x32xbf16>, vector<32x32xbf16>, vector<16x32xf32> -> vector<16x32xf32>
    %c0_5 = arith.constant 0 : index
    %c0_6 = arith.constant 0 : index
    %5 = vector.load %arg9[%c0_5, %c0_6] : memref<1x32xf32, #tpu.memory_space<vmem>>, vector<1x32xf32>
    %6 = vector.broadcast %5 : vector<1x32xf32> to vector<16x32xf32>
    %7 = arith.addf %4, %6 : vector<16x32xf32>
    %8 = vector.shape_cast %7 : vector<16x32xf32> to vector<2x8x32xf32>
    %c0_7 = arith.constant 0 : index
    %c0_8 = arith.constant 0 : index
    %c0_9 = arith.constant 0 : index
    %9 = vector.load %arg2[%c0_7, %c0_8, %c0_9] : memref<2x16x32xbf16, #tpu.memory_space<vmem>>, vector<2x16x32xbf16>
    %10 = vector.shape_cast %9 : vector<2x16x32xbf16> to vector<32x32xbf16>
    %c0_10 = arith.constant 0 : index
    %c0_11 = arith.constant 0 : index
    %11 = vector.load %arg10[%c0_10, %c0_11] : memref<32x64xbf16, #tpu.memory_space<vmem>>, vector<32x64xbf16>
    %cst_12 = arith.constant dense<0.000000e+00> : vector<32x64xf32>
    %12 = tpu.matmul %10, %11, %cst_12 {dimension_numbers = #tpu.dot_dimension_numbers<[1], [0], [0], [1], [0, 0, 1, 1], [], []>} : vector<32x32xbf16>, vector<32x64xbf16>, vector<32x64xf32> -> vector<32x64xf32>
    %c0_13 = arith.constant 0 : index
    %c0_14 = arith.constant 0 : index
    %13 = vector.load %arg11[%c0_13, %c0_14] : memref<1x64xf32, #tpu.memory_space<vmem>>, vector<1x64xf32>
    %14 = vector.broadcast %13 : vector<1x64xf32> to vector<32x64xf32>
    %15 = arith.addf %12, %14 : vector<32x64xf32>
    %16 = vector.shape_cast %15 : vector<32x64xf32> to vector<2x16x64xf32>
    %17 = vector.extract_strided_slice %16 {offsets = [0, 0, 0], sizes = [2, 16, 32], strides = [1, 1, 1]} : vector<2x16x64xf32> to vector<2x16x32xf32>
    %18 = vector.extract_strided_slice %16 {offsets = [0, 0, 32], sizes = [2, 16, 32], strides = [1, 1, 1]} : vector<2x16x64xf32> to vector<2x16x32xf32>
    %c0_15 = arith.constant 0 : index
    %c0_16 = arith.constant 0 : index
    %c0_17 = arith.constant 0 : index
    %19 = vector.load %arg4[%c0_15, %c0_16, %c0_17] : memref<2x16x8xbf16, #tpu.memory_space<vmem>>, vector<2x16x8xbf16>
    %20 = arith.truncf %8 : vector<2x8x32xf32> to vector<2x8x32xbf16>
    "tpu.trace_start"() <{level = 10 : i32, message = "bln,bnh->blh"}> : () -> ()
    %cst_18 = arith.constant dense<0.000000e+00> : vector<2x16x32xf32>
    %21 = tpu.matmul %19, %20, %cst_18 {dimension_numbers = #tpu.dot_dimension_numbers<[2], [1], [1], [2], [0, 0, 0, 1, 1, 2], [0], [0]>} : vector<2x16x8xbf16>, vector<2x8x32xbf16>, vector<2x16x32xf32> -> vector<2x16x32xf32>
    "tpu.trace_stop"() : () -> ()
    %22 = arith.mulf %21, %21 : vector<2x16x32xf32>
    %cst_19 = arith.constant dense<0.000000e+00> : vector<2x16xf32>
    %23 = vector.multi_reduction <add>, %22, %cst_19 [2] : vector<2x16x32xf32> to vector<2x16xf32>
    %24 = vector.shape_cast %23 : vector<2x16xf32> to vector<2x16x1xf32>
    %cst_20 = arith.constant 1.000000e-30 : f32
    %25 = vector.broadcast %cst_20 : f32 to vector<2x16x1xf32>
    %26 = arith.addf %24, %25 : vector<2x16x1xf32>
    %27 = math.rsqrt %26 : vector<2x16x1xf32>
    %28 = vector.broadcast %27 : vector<2x16x1xf32> to vector<2x16x32xf32>
    %29 = arith.mulf %21, %28 : vector<2x16x32xf32>
    %c0_21 = arith.constant 0 : index
    %c0_22 = arith.constant 0 : index
    %c0_23 = arith.constant 0 : index
    %30 = vector.load %arg5[%c0_21, %c0_22, %c0_23] : memref<2x16x16xbf16, #tpu.memory_space<vmem>>, vector<2x16x16xbf16>
    %31 = arith.truncf %17 : vector<2x16x32xf32> to vector<2x16x32xbf16>
    "tpu.trace_start"() <{level = 10 : i32, message = "blm,bmh->blh"}> : () -> ()
    %cst_24 = arith.constant dense<0.000000e+00> : vector<2x16x32xf32>
    %32 = tpu.matmul %30, %31, %cst_24 {dimension_numbers = #tpu.dot_dimension_numbers<[2], [1], [1], [2], [0, 0, 0, 1, 1, 2], [0], [0]>} : vector<2x16x16xbf16>, vector<2x16x32xbf16>, vector<2x16x32xf32> -> vector<2x16x32xf32>
    %cst_25 = arith.constant 0.000000e+00 : bf16
    "tpu.trace_stop"() : () -> ()
    %33 = vector.broadcast %cst_25 : bf16 to vector<2x16x16xbf16>
    %34 = arith.cmpf one, %30, %33 : vector<2x16x16xbf16>
    %35 = arith.extui %34 : vector<2x16x16xi1> to vector<2x16x16xi32>
    %36 = arith.sitofp %35 : vector<2x16x16xi32> to vector<2x16x16xf32>
    %cst_26 = arith.constant dense<0.000000e+00> : vector<2x16xf32>
    %37 = vector.multi_reduction <add>, %36, %cst_26 [2] : vector<2x16x16xf32> to vector<2x16xf32>
    %38 = vector.shape_cast %37 : vector<2x16xf32> to vector<2x16x1xf32>
    %cst_27 = arith.constant 1.000000e-30 : f32
    %39 = vector.broadcast %cst_27 : f32 to vector<2x16x1xf32>
    %40 = arith.addf %38, %39 : vector<2x16x1xf32>
    %cst_28 = arith.constant 1.000000e+00 : f32
    %41 = vector.broadcast %cst_28 : f32 to vector<2x16x1xf32>
    %42 = arith.divf %41, %40 : vector<2x16x1xf32>
    %43 = vector.broadcast %42 : vector<2x16x1xf32> to vector<2x16x32xf32>
    %44 = arith.mulf %32, %43 : vector<2x16x32xf32>
    %45 = arith.mulf %44, %44 : vector<2x16x32xf32>
    %cst_29 = arith.constant dense<0.000000e+00> : vector<2x16xf32>
    %46 = vector.multi_reduction <add>, %45, %cst_29 [2] : vector<2x16x32xf32> to vector<2x16xf32>
    %47 = vector.shape_cast %46 : vector<2x16xf32> to vector<2x16x1xf32>
    %cst_30 = arith.constant 1.000000e-30 : f32
    %48 = vector.broadcast %cst_30 : f32 to vector<2x16x1xf32>
    %49 = arith.addf %47, %48 : vector<2x16x1xf32>
    %50 = math.rsqrt %49 : vector<2x16x1xf32>
    %51 = vector.broadcast %50 : vector<2x16x1xf32> to vector<2x16x32xf32>
    %52 = arith.mulf %44, %51 : vector<2x16x32xf32>
    %c0_31 = arith.constant 0 : index
    %c0_32 = arith.constant 0 : index
    %c0_33 = arith.constant 0 : index
    %53 = vector.load %arg6[%c0_31, %c0_32, %c0_33] : memref<2x16x16xbf16, #tpu.memory_space<vmem>>, vector<2x16x16xbf16>
    %54 = arith.truncf %18 : vector<2x16x32xf32> to vector<2x16x32xbf16>
    "tpu.trace_start"() <{level = 10 : i32, message = "blm,bmh->blh"}> : () -> ()
    %cst_34 = arith.constant dense<0.000000e+00> : vector<2x16x32xf32>
    %55 = tpu.matmul %53, %54, %cst_34 {dimension_numbers = #tpu.dot_dimension_numbers<[2], [1], [1], [2], [0, 0, 0, 1, 1, 2], [0], [0]>} : vector<2x16x16xbf16>, vector<2x16x32xbf16>, vector<2x16x32xf32> -> vector<2x16x32xf32>
    %cst_35 = arith.constant 0.000000e+00 : bf16
    "tpu.trace_stop"() : () -> ()
    %56 = vector.broadcast %cst_35 : bf16 to vector<2x16x16xbf16>
    %57 = arith.cmpf one, %53, %56 : vector<2x16x16xbf16>
    %58 = arith.extui %57 : vector<2x16x16xi1> to vector<2x16x16xi32>
    %59 = arith.sitofp %58 : vector<2x16x16xi32> to vector<2x16x16xf32>
    %cst_36 = arith.constant dense<0.000000e+00> : vector<2x16xf32>
    %60 = vector.multi_reduction <add>, %59, %cst_36 [2] : vector<2x16x16xf32> to vector<2x16xf32>
    %61 = vector.shape_cast %60 : vector<2x16xf32> to vector<2x16x1xf32>
    %cst_37 = arith.constant 1.000000e-30 : f32
    %62 = vector.broadcast %cst_37 : f32 to vector<2x16x1xf32>
    %63 = arith.addf %61, %62 : vector<2x16x1xf32>
    %cst_38 = arith.constant 1.000000e+00 : f32
    %64 = vector.broadcast %cst_38 : f32 to vector<2x16x1xf32>
    %65 = arith.divf %64, %63 : vector<2x16x1xf32>
    %66 = vector.broadcast %65 : vector<2x16x1xf32> to vector<2x16x32xf32>
    %67 = arith.mulf %55, %66 : vector<2x16x32xf32>
    %68 = arith.mulf %67, %67 : vector<2x16x32xf32>
    %cst_39 = arith.constant dense<0.000000e+00> : vector<2x16xf32>
    %69 = vector.multi_reduction <add>, %68, %cst_39 [2] : vector<2x16x32xf32> to vector<2x16xf32>
    %70 = vector.shape_cast %69 : vector<2x16xf32> to vector<2x16x1xf32>
    %cst_40 = arith.constant 1.000000e-30 : f32
    %71 = vector.broadcast %cst_40 : f32 to vector<2x16x1xf32>
    %72 = arith.addf %70, %71 : vector<2x16x1xf32>
    %73 = math.rsqrt %72 : vector<2x16x1xf32>
    %74 = vector.broadcast %73 : vector<2x16x1xf32> to vector<2x16x32xf32>
    %75 = arith.mulf %67, %74 : vector<2x16x32xf32>
    %76 = tpu.concatenate %29, %52, %75 in 2 : vector<2x16x32xf32>, vector<2x16x32xf32>, vector<2x16x32xf32> -> vector<2x16x96xf32>
    %77 = arith.truncf %76 : vector<2x16x96xf32> to vector<2x16x96xbf16>
    %78 = vector.shape_cast %77 : vector<2x16x96xbf16> to vector<32x96xbf16>
    %c0_41 = arith.constant 0 : index
    %c0_42 = arith.constant 0 : index
    %79 = vector.load %arg12[%c0_41, %c0_42] : memref<96x32xbf16, #tpu.memory_space<vmem>>, vector<96x32xbf16>
    %cst_43 = arith.constant dense<0.000000e+00> : vector<32x32xf32>
    %80 = tpu.matmul %78, %79, %cst_43 {dimension_numbers = #tpu.dot_dimension_numbers<[1], [0], [0], [1], [0, 0, 1, 1], [], []>} : vector<32x96xbf16>, vector<96x32xbf16>, vector<32x32xf32> -> vector<32x32xf32>
    %c0_44 = arith.constant 0 : index
    %c0_45 = arith.constant 0 : index
    %81 = vector.load %arg13[%c0_44, %c0_45] : memref<1x32xf32, #tpu.memory_space<vmem>>, vector<1x32xf32>
    %82 = vector.broadcast %81 : vector<1x32xf32> to vector<32x32xf32>
    %83 = arith.addf %80, %82 : vector<32x32xf32>
    %cst_46 = arith.constant 0.000000e+00 : f32
    %84 = vector.broadcast %cst_46 : f32 to vector<32x32xf32>
    %85 = arith.maximumf %83, %84 : vector<32x32xf32>
    %86 = vector.shape_cast %85 : vector<32x32xf32> to vector<2x16x32xf32>
    %c0_47 = arith.constant 0 : index
    %c0_48 = arith.constant 0 : index
    %c0_49 = arith.constant 0 : index
    %87 = vector.load %arg7[%c0_47, %c0_48, %c0_49] : memref<2x1x16xf32, #tpu.memory_space<vmem>>, vector<2x1x16xf32>
    %cst_50 = arith.constant 0.000000e+00 : f32
    %88 = vector.broadcast %cst_50 : f32 to vector<2x1x16xf32>
    %89 = arith.cmpf one, %87, %88 : vector<2x1x16xf32>
    %90 = arith.extui %89 : vector<2x1x16xi1> to vector<2x1x16xi32>
    %91 = arith.sitofp %90 : vector<2x1x16xi32> to vector<2x1x16xf32>
    %cst_51 = arith.constant dense<0.000000e+00> : vector<2x1xf32>
    %92 = vector.multi_reduction <add>, %91, %cst_51 [2] : vector<2x1x16xf32> to vector<2x1xf32>
    "tpu.trace_start"() <{level = 10 : i32, message = "bql,bld->bqd"}> : () -> ()
    %cst_52 = arith.constant dense<0.000000e+00> : vector<2x1x32xf32>
    %93 = tpu.matmul %87, %86, %cst_52 {dimension_numbers = #tpu.dot_dimension_numbers<[2], [1], [1], [2], [0, 0, 0, 1, 1, 2], [0], [0]>} : vector<2x1x16xf32>, vector<2x16x32xf32>, vector<2x1x32xf32> -> vector<2x1x32xf32>
    "tpu.trace_stop"() : () -> ()
    %94 = vector.shape_cast %93 : vector<2x1x32xf32> to vector<2x32xf32>
    %cst_53 = arith.constant 1.000000e-30 : f32
    %95 = vector.broadcast %cst_53 : f32 to vector<2x1xf32>
    %96 = arith.addf %92, %95 : vector<2x1xf32>
    %cst_54 = arith.constant 1.000000e+00 : f32
    %97 = vector.broadcast %cst_54 : f32 to vector<2x1xf32>
    %98 = arith.divf %97, %96 : vector<2x1xf32>
    %99 = vector.broadcast %98 : vector<2x1xf32> to vector<2x32xf32>
    %100 = arith.mulf %94, %99 : vector<2x32xf32>
    %101 = arith.truncf %100 : vector<2x32xf32> to vector<2x32xbf16>
    %c0_55 = arith.constant 0 : index
    %c0_56 = arith.constant 0 : index
    %102 = vector.load %arg14[%c0_55, %c0_56] : memref<32x64xbf16, #tpu.memory_space<vmem>>, vector<32x64xbf16>
    %cst_57 = arith.constant dense<0.000000e+00> : vector<2x64xf32>
    %103 = tpu.matmul %101, %102, %cst_57 {dimension_numbers = #tpu.dot_dimension_numbers<[1], [0], [0], [1], [0, 0, 1, 1], [], []>} : vector<2x32xbf16>, vector<32x64xbf16>, vector<2x64xf32> -> vector<2x64xf32>
    %104 = vector.extract_strided_slice %103 {offsets = [0, 0], sizes = [2, 32], strides = [1, 1]} : vector<2x64xf32> to vector<2x32xf32>
    %c0_58 = arith.constant 0 : index
    %c0_59 = arith.constant 0 : index
    %105 = vector.load %arg15[%c0_58, %c0_59] : memref<1x32xf32, #tpu.memory_space<vmem>>, vector<1x32xf32>
    %106 = vector.broadcast %105 : vector<1x32xf32> to vector<2x32xf32>
    %107 = arith.addf %104, %106 : vector<2x32xf32>
    %cst_60 = arith.constant 0.000000e+00 : f32
    %108 = vector.broadcast %cst_60 : f32 to vector<2x32xf32>
    %109 = arith.maximumf %107, %108 : vector<2x32xf32>
    %c0_61 = arith.constant 0 : index
    %c0_62 = arith.constant 0 : index
    %110 = vector.load %arg3[%c0_61, %c0_62] : memref<2x32xf32, #tpu.memory_space<vmem>>, vector<2x32xf32>
    %111 = vector.extract_strided_slice %103 {offsets = [0, 32], sizes = [2, 32], strides = [1, 1]} : vector<2x64xf32> to vector<2x32xf32>
    %c0_63 = arith.constant 0 : index
    %c0_64 = arith.constant 0 : index
    %112 = vector.load %arg17[%c0_63, %c0_64] : memref<1x32xf32, #tpu.memory_space<vmem>>, vector<1x32xf32>
    %113 = vector.broadcast %112 : vector<1x32xf32> to vector<2x32xf32>
    %114 = arith.addf %111, %113 : vector<2x32xf32>
    %115 = arith.truncf %110 : vector<2x32xf32> to vector<2x32xbf16>
    %c0_65 = arith.constant 0 : index
    %c0_66 = arith.constant 0 : index
    %116 = vector.load %arg16[%c0_65, %c0_66] : memref<32x32xbf16, #tpu.memory_space<vmem>>, vector<32x32xbf16>
    %cst_67 = arith.constant dense<0.000000e+00> : vector<2x32xf32>
    %117 = tpu.matmul %115, %116, %cst_67 {dimension_numbers = #tpu.dot_dimension_numbers<[1], [0], [0], [1], [0, 0, 1, 1], [], []>} : vector<2x32xbf16>, vector<32x32xbf16>, vector<2x32xf32> -> vector<2x32xf32>
    %118 = arith.addf %114, %117 : vector<2x32xf32>
    %119 = arith.negf %118 : vector<2x32xf32>
    %120 = math.exp %119 : vector<2x32xf32>
    %cst_68 = arith.constant 1.000000e+00 : f32
    %121 = vector.broadcast %cst_68 : f32 to vector<2x32xf32>
    %122 = arith.addf %121, %120 : vector<2x32xf32>
    %123 = arith.divf %121, %122 : vector<2x32xf32>
    %124 = vector.broadcast %0 : f32 to vector<2x32xf32>
    %125 = arith.maximumf %123, %124 : vector<2x32xf32>
    %126 = arith.mulf %125, %110 : vector<2x32xf32>
    %cst_69 = arith.constant 1.000000e+00 : f32
    %127 = vector.broadcast %cst_69 : f32 to vector<2x32xf32>
    %128 = arith.subf %127, %123 : vector<2x32xf32>
    %129 = arith.mulf %128, %109 : vector<2x32xf32>
    %130 = arith.addf %126, %129 : vector<2x32xf32>
    %c0_70 = arith.constant 0 : index
    %c0_71 = arith.constant 0 : index
    %131 = vector.load %arg18[%c0_70, %c0_71] : memref<2x32xf32, #tpu.memory_space<vmem>>, vector<2x32xf32>
    tpu.vector_store %arg18[%c0_70, %c0_71], %130 {strides = array<i32>} : memref<2x32xf32, #tpu.memory_space<vmem>>, vector<2x32xf32>,
    return
  }
}

</mosaic_0001>

<llo_original>
// kernel: tpu_custom_call.1
$region0: #{tpu_custom_call.1}
  #allocation0 [shape = 'u32[]', space=smem, size = 0x4, offset = 0x4, fixed_abs, tag = 'smem constant byte address 0x4 - core index']
  #allocation1 [shape = 'u32[72,128]{1,0:T(1,128)}', space=vmem, size = 0x9000, scoped, tag = 'internal scratch']
  #allocation2 [shape = 'f32[1]{0:T(128)S(6)}', space=smem, size = 0x200, scoped, tag = 'scoped memory for tpu_custom_call.1']
  %s0 = inlined_call_operand.<no memory space> [shape: f32[1], index: 0, kind: input, shape index: {}]
  %s1 = inlined_call_operand.hbm [shape: bf16[2,8,32], index: 1, kind: input, shape index: {}]
  %s2 = inlined_call_operand.vmem [shape: bf16[2,16,32], index: 2, kind: input, shape index: {}]
  %s3 = inlined_call_operand.hbm [shape: f32[2,32], index: 3, kind: input, shape index: {}]
  %s4 = inlined_call_operand.vmem [shape: bf16[2,16,8], index: 4, kind: input, shape index: {}]
  %s5 = inlined_call_operand.vmem [shape: bf16[2,16,16], index: 5, kind: input, shape index: {}]
  %s6 = inlined_call_operand.vmem [shape: bf16[2,16,16], index: 6, kind: input, shape index: {}]
  %s7 = inlined_call_operand.hbm [shape: f32[2,1,16], index: 7, kind: input, shape index: {}]
  %s8 = inlined_call_operand.vmem [shape: bf16[32,32], index: 8, kind: input, shape index: {}]
  %s9 = inlined_call_operand.vmem [shape: f32[1,32], index: 9, kind: input, shape index: {}]
  %s10 = inlined_call_operand.vmem [shape: bf16[32,64], index: 10, kind: input, shape index: {}]
  %s11 = inlined_call_operand.vmem [shape: f32[1,64], index: 11, kind: input, shape index: {}]
  %s12 = inlined_call_operand.vmem [shape: bf16[96,32], index: 12, kind: input, shape index: {}]
  %s13 = inlined_call_operand.vmem [shape: f32[1,32], index: 13, kind: input, shape index: {}]
  %s14 = inlined_call_operand.hbm [shape: bf16[32,64], index: 14, kind: input, shape index: {}]
  %s15 = inlined_call_operand.vmem [shape: f32[1,32], index: 15, kind: input, shape index: {}]
  %s16 = inlined_call_operand.hbm [shape: bf16[32,32], index: 16, kind: input, shape index: {}]
  %s17 = inlined_call_operand.vmem [shape: f32[1,32], index: 17, kind: input, shape index: {}]
  %s18 = inlined_call_operand.hbm [shape: f32[2,32], index: 18, kind: output, shape index: {}]
  %s19 = sld [smem:[#allocation0]]
  $region102: #{tpu_custom_call.1} parent=0
    _
  %s21 = ssub.s32 1, %s19
  %s22 = scalar_select 0, %s21, %s19
  %23 = sst [smem:[#allocation2]] %s0
  $region1: #{tpu_custom_call.1} parent=0
    #allocation3 [shape = 'u8[4096]{0}', space=vmem, size = 0x1000, scoped, tag = 'input window, operand 1, single buffered']
    #allocation4 [shape = 's32[1]{0}', space=sflag, size = 0x4, scoped, tag = 'scoped memory for tpu_custom_call.1']
    #allocation5 [shape = 's32[1]{0}', space=sflag, size = 0x4, scoped, tag = 'scoped memory for tpu_custom_call.1']
    #allocation6 [shape = 'u8[1024]{0}', space=vmem, size = 0x400, scoped, tag = 'input window, operand 3, single buffered']
    #allocation7 [shape = 's32[1]{0}', space=sflag, size = 0x4, scoped, tag = 'scoped memory for tpu_custom_call.1']
    #allocation8 [shape = 'u8[1024]{0}', space=vmem, size = 0x400, scoped, tag = 'input window, operand 7, single buffered']
    #allocation9 [shape = 'u8[8192]{0}', space=vmem, size = 0x2000, scoped, tag = 'input window, operand 14, single buffered']
    #allocation10 [shape = 's32[1]{0}', space=sflag, size = 0x4, scoped, tag = 'scoped memory for tpu_custom_call.1']
    #allocation11 [shape = 'u8[8192]{0}', space=vmem, size = 0x2000, scoped, tag = 'input window, operand 16, single buffered']
    #allocation12 [shape = 'u8[1024]{0}', space=vmem, size = 0x400, scoped, tag = 'output window, operand 0, single buffered']
    %24 = vsyncpa [#allocation4], 0
    %25 = vsyncpa [#allocation7], 0
    %26 = vsyncpa [#allocation10], 0
    %27 = vsyncpa [#allocation5], 0
    // Predicated region
    $region2: #{tpu_custom_call.1} parent=1 // pred_check
      _
    $region3: #{tpu_custom_call.1} parent=1 // pred_check_branch
      %29 = sbr.rel (0) target = $region5
    $region4: #{tpu_custom_call.1} parent=1 // pred_region
      _
    $region5: #{tpu_custom_call.1} parent=1 // pred_fallthru
      _
    // Predicated region
    $region6: #{tpu_custom_call.1} parent=1 // pred_check
      _
    $region7: #{tpu_custom_call.1} parent=1 // pred_check_branch
      %31 = sbr.rel (0) target = $region9
    $region8: #{tpu_custom_call.1} parent=1 // pred_region
      %33 = vsyncadd [#allocation4], 0
      %s34 = sshll.u32 %s1, 4
      %s35 = int_to_ptr.hbm [resolvable:$true] %s34
      %s36 = sshll.u32 [#allocation3], 4
      %s37 = int_to_ptr.vmem [resolvable:$true] %s36
      %42 = dma.hbm_to_vmem [thread:$0]  %s35, 128, %s37, [#allocation4], 64, 64, 4
    $region9: #{tpu_custom_call.1} parent=1 // pred_fallthru
      _
    // Predicated region
    $region10: #{tpu_custom_call.1} parent=1 // pred_check
      _
    $region11: #{tpu_custom_call.1} parent=1 // pred_check_branch
      %44 = sbr.rel (0) target = $region13
    $region12: #{tpu_custom_call.1} parent=1 // pred_region
      _
    $region13: #{tpu_custom_call.1} parent=1 // pred_fallthru
      _
    // Predicated region
    $region14: #{tpu_custom_call.1} parent=1 // pred_check
      _
    $region15: #{tpu_custom_call.1} parent=1 // pred_check_branch
      %46 = sbr.rel (0) target = $region17
    $region16: #{tpu_custom_call.1} parent=1 // pred_region
      %48 = vsyncadd [#allocation7], 0
      %s50 = sshll.u32 %s3, 4
      %s51 = int_to_ptr.hbm [resolvable:$true] %s50
      %s52 = sshll.u32 [#allocation6], 4
      %s53 = int_to_ptr.vmem [resolvable:$true] %s52
      %55 = dma.hbm_to_vmem [thread:$0]  %s51, 32, %s53, [#allocation7]
    $region17: #{tpu_custom_call.1} parent=1 // pred_fallthru
      _
    // Predicated region
    $region18: #{tpu_custom_call.1} parent=1 // pred_check
      _
    $region19: #{tpu_custom_call.1} parent=1 // pred_check_branch
      %57 = sbr.rel (0) target = $region21
    $region20: #{tpu_custom_call.1} parent=1 // pred_region
      _
    $region21: #{tpu_custom_call.1} parent=1 // pred_fallthru
      _
    // Predicated region
    $region22: #{tpu_custom_call.1} parent=1 // pred_check
      _
    $region23: #{tpu_custom_call.1} parent=1 // pred_check_branch
      %59 = sbr.rel (0) target = $region25
    $region24: #{tpu_custom_call.1} parent=1 // pred_region
      _
    $region25: #{tpu_custom_call.1} parent=1 // pred_fallthru
      _
    // Predicated region
    $region26: #{tpu_custom_call.1} parent=1 // pred_check
      _
    $region27: #{tpu_custom_call.1} parent=1 // pred_check_branch
      %61 = sbr.rel (0) target = $region29
    $region28: #{tpu_custom_call.1} parent=1 // pred_region
      _
    $region29: #{tpu_custom_call.1} parent=1 // pred_fallthru
      _
    // Predicated region
    $region30: #{tpu_custom_call.1} parent=1 // pred_check
      _
    $region31: #{tpu_custom_call.1} parent=1 // pred_check_branch
      %63 = sbr.rel (0) target = $region33
    $region32: #{tpu_custom_call.1} parent=1 // pred_region
      %65 = vsyncadd [#allocation7], 0
      %s66 = sshll.u32 %s7, 4
      %s67 = int_to_ptr.hbm [resolvable:$true] %s66
      %s68 = sshll.u32 [#allocation8], 4
      %s69 = int_to_ptr.vmem [resolvable:$true] %s68
      %74 = dma.hbm_to_vmem [thread:$0]  %s67, 32, %s69, [#allocation7], 16, 16, 1
    $region33: #{tpu_custom_call.1} parent=1 // pred_fallthru
      _
    // Predicated region
    $region34: #{tpu_custom_call.1} parent=1 // pred_check
      _
    $region35: #{tpu_custom_call.1} parent=1 // pred_check_branch
      %76 = sbr.rel (0) target = $region37
    $region36: #{tpu_custom_call.1} parent=1 // pred_region
      _
    $region37: #{tpu_custom_call.1} parent=1 // pred_fallthru
      _
    // Predicated region
    $region38: #{tpu_custom_call.1} parent=1 // pred_check
      _
    $region39: #{tpu_custom_call.1} parent=1 // pred_check_branch
      %78 = sbr.rel (0) target = $region41
    $region40: #{tpu_custom_call.1} parent=1 // pred_region
      _
    $region41: #{tpu_custom_call.1} parent=1 // pred_fallthru
      _
    // Predicated region
    $region42: #{tpu_custom_call.1} parent=1 // pred_check
      _
    $region43: #{tpu_custom_call.1} parent=1 // pred_check_branch
      %80 = sbr.rel (0) target = $region45
    $region44: #{tpu_custom_call.1} parent=1 // pred_region
      _
    $region45: #{tpu_custom_call.1} parent=1 // pred_fallthru
      _
    // Predicated region
    $region46: #{tpu_custom_call.1} parent=1 // pred_check
      _
    $region47: #{tpu_custom_call.1} parent=1 // pred_check_branch
      %82 = sbr.rel (0) target = $region49
    $region48: #{tpu_custom_call.1} parent=1 // pred_region
      _
    $region49: #{tpu_custom_call.1} parent=1 // pred_fallthru
      _
    // Predicated region
    $region50: #{tpu_custom_call.1} parent=1 // pred_check
      _
    $region51: #{tpu_custom_call.1} parent=1 // pred_check_branch
      %84 = sbr.rel (0) target = $region53
    $region52: #{tpu_custom_call.1} parent=1 // pred_region
      _
    $region53: #{tpu_custom_call.1} parent=1 // pred_fallthru
      _
    // Predicated region
    $region54: #{tpu_custom_call.1} parent=1 // pred_check
      _
    $region55: #{tpu_custom_call.1} parent=1 // pred_check_branch
      %86 = sbr.rel (0) target = $region57
    $region56: #{tpu_custom_call.1} parent=1 // pred_region
      _
    $region57: #{tpu_custom_call.1} parent=1 // pred_fallthru
      _
    // Predicated region
    $region58: #{tpu_custom_call.1} parent=1 // pred_check
      _
    $region59: #{tpu_custom_call.1} parent=1 // pred_check_branch
      %88 = sbr.rel (0) target = $region61
    $region60: #{tpu_custom_call.1} parent=1 // pred_region
      %90 = vsyncadd [#allocation10], 0
      %s91 = sshll.u32 %s14, 4
      %s92 = int_to_ptr.hbm [resolvable:$true] %s91
      %s93 = sshll.u32 [#allocation9], 4
      %s94 = int_to_ptr.vmem [resolvable:$true] %s93
      %99 = dma.hbm_to_vmem [thread:$0]  %s92, 256, %s94, [#allocation10], 64, 64, 4
    $region61: #{tpu_custom_call.1} parent=1 // pred_fallthru
      _
    // Predicated region
    $region62: #{tpu_custom_call.1} parent=1 // pred_check
      _
    $region63: #{tpu_custom_call.1} parent=1 // pred_check_branch
      %101 = sbr.rel (0) target = $region65
    $region64: #{tpu_custom_call.1} parent=1 // pred_region
      _
    $region65: #{tpu_custom_call.1} parent=1 // pred_fallthru
      _
    // Predicated region
    $region66: #{tpu_custom_call.1} parent=1 // pred_check
      _
    $region67: #{tpu_custom_call.1} parent=1 // pred_check_branch
      %103 = sbr.rel (0) target = $region69
    $region68: #{tpu_custom_call.1} parent=1 // pred_region
      %105 = vsyncadd [#allocation10], 0
      %s106 = sshll.u32 %s16, 4
      %s107 = int_to_ptr.hbm [resolvable:$true] %s106
      %s108 = sshll.u32 [#allocation11], 4
      %s109 = int_to_ptr.vmem [resolvable:$true] %s108
      %114 = dma.hbm_to_vmem [thread:$0]  %s107, 256, %s109, [#allocation10], 64, 64, 4
    $region69: #{tpu_custom_call.1} parent=1 // pred_fallthru
      _
    // Predicated region
    $region70: #{tpu_custom_call.1} parent=1 // pred_check
      _
    $region71: #{tpu_custom_call.1} parent=1 // pred_check_branch
      %116 = sbr.rel (0) target = $region73
    $region72: #{tpu_custom_call.1} parent=1 // pred_region
      _
    $region73: #{tpu_custom_call.1} parent=1 // pred_fallthru
      _
    // Predicated region
    $region74: #{tpu_custom_call.1} parent=1 // pred_check
      _
    $region75: #{tpu_custom_call.1} parent=1 // pred_check_branch
      %118 = sbr.rel (0) target = $region77
    $region76: #{tpu_custom_call.1} parent=1 // pred_region
      %120 = dma.done [#allocation4], 128
    $region77: #{tpu_custom_call.1} parent=1 // pred_fallthru
      _
    // Predicated region
    $region78: #{tpu_custom_call.1} parent=1 // pred_check
      _
    $region79: #{tpu_custom_call.1} parent=1 // pred_check_branch
      %122 = sbr.rel (0) target = $region81
    $region80: #{tpu_custom_call.1} parent=1 // pred_region
      %124 = dma.done [#allocation7], 32
    $region81: #{tpu_custom_call.1} parent=1 // pred_fallthru
      _
    // Predicated region
    $region82: #{tpu_custom_call.1} parent=1 // pred_check
      _
    $region83: #{tpu_custom_call.1} parent=1 // pred_check_branch
      %126 = sbr.rel (0) target = $region85
    $region84: #{tpu_custom_call.1} parent=1 // pred_region
      %128 = dma.done [#allocation7], 32
    $region85: #{tpu_custom_call.1} parent=1 // pred_fallthru
      _
    // Predicated region
    $region86: #{tpu_custom_call.1} parent=1 // pred_check
      _
    $region87: #{tpu_custom_call.1} parent=1 // pred_check_branch
      %130 = sbr.rel (0) target = $region89
    $region88: #{tpu_custom_call.1} parent=1 // pred_region
      %132 = dma.done [#allocation10], 256
    $region89: #{tpu_custom_call.1} parent=1 // pred_fallthru
      _
    // Predicated region
    $region90: #{tpu_custom_call.1} parent=1 // pred_check
      _
    $region91: #{tpu_custom_call.1} parent=1 // pred_check_branch
      %134 = sbr.rel (0) target = $region93
    $region92: #{tpu_custom_call.1} parent=1 // pred_region
      %136 = dma.done [#allocation10], 256
    $region93: #{tpu_custom_call.1} parent=1 // pred_fallthru
      _
    %s138 = sld [smem:[#allocation2]]
    %v139 = vld [vmem:[#allocation3] sm:$0xf]
    %v140 = vld [vmem:[#allocation3 + $0x4] sm:$0xf]
    %v141 = vld [vmem:[%s8] sm:$0xf]
    %v142 = vld [vmem:[%s8 + $0x4] sm:$0xf]
    %v143 = vld [vmem:[%s8 + $0x8] sm:$0xf]
    %v144 = vld [vmem:[%s8 + $0xc] sm:$0xf]
    %v145 = vld [vmem:[%s9] sm:$0x1]
    %v147 = vperm.slane %v145, 0
    %v151 = vunpack.c.l.b16 %v139
    %v152 = vunpack.c.l.b16 %v140
    %v153 = vpack.c.b16 %v152, %v151
    %v158 = vunpack.c.l.b16 %v141
    %v159 = vunpack.c.l.b16 %v142
    %v160 = vunpack.c.l.b16 %v143
    %v161 = vunpack.c.l.b16 %v144
    %v162 = vpack.c.b16 %v159, %v158
    %v163 = vpack.c.b16 %v161, %v160
    %vm166 = vcmask 261120
    %v168 = vsel %vm166, %v153, 0
    %170 = vmatpush.bf16.msra.mxu0 0
    %171 = vmatpush.bf16.msra.mxu0 0
    %172 = vmatpush.bf16.msra.mxu0 0
    %173 = vmatpush.bf16.msra.mxu0 0
    %174 = vmatpush.bf16.msra.mxu0 0
    %175 = vmatpush.bf16.msra.mxu0 0
    %176 = vmatpush.bf16.msra.mxu0 %v163
    %177 = vmatpush.bf16.msra.mxu0 %v162
    %178 = vmatmul.bf16.gmra.mxu0 %v168
    %v179 = vpop.f32.mrf.mxu0
    %v180 = vadd.f32 %v147, %v179
    %v181 = vpop.f32.mrf.mxu0
    %v182 = vadd.f32 %v147, %v181
    %183 = vdwg.mxu0
    %v184 = vld [vmem:[%s2] sm:$0xf]
    %v185 = vld [vmem:[%s2 + $0x4] sm:$0xf]
    %v186 = vld [vmem:[%s2 + $0x8] sm:$0xf]
    %v187 = vld [vmem:[%s2 + $0xc] sm:$0xf]
    %v188 = vld [vmem:[%s10] sm:$0xf]
    %v189 = vld [vmem:[%s10 + $0x4] sm:$0xf]
    %v190 = vld [vmem:[%s10 + $0x8] sm:$0xf]
    %v191 = vld [vmem:[%s10 + $0xc] sm:$0xf]
    %v192 = vld [vmem:[%s11] sm:$0x1]
    %v194 = vperm.slane %v192, 0
    %v200 = vunpack.c.l.b16 %v184
    %v201 = vunpack.c.l.b16 %v185
    %v202 = vunpack.c.l.b16 %v186
    %v203 = vunpack.c.l.b16 %v187
    %v204 = vpack.c.b16 %v201, %v200
    %v205 = vpack.c.b16 %v203, %v202
    %v210 = vunpack.c.l.b16 %v188
    %v211 = vunpack.c.l.b16 %v189
    %v212 = vunpack.c.l.b16 %v190
    %v213 = vunpack.c.l.b16 %v191
    %v214 = vpack.c.b16 %v211, %v210
    %v215 = vpack.c.b16 %v213, %v212
    %v219 = vsel %vm166, %v204, 0
    %v222 = vsel %vm166, %v205, 0
    %224 = vmatpush.bf16.msra.mxu0 0
    %225 = vmatpush.bf16.msra.mxu0 0
    %226 = vmatpush.bf16.msra.mxu0 0
    %227 = vmatpush.bf16.msra.mxu0 0
    %228 = vmatpush.bf16.msra.mxu0 0
    %229 = vmatpush.bf16.msra.mxu0 0
    %230 = vmatpush.bf16.msra.mxu0 %v215
    %231 = vmatpush.bf16.msra.mxu0 %v214
    %232 = vmatmul.bf16.gmra.mxu0 %v219
    %v233 = vpop.f32.mrf.mxu0
    %v234 = vadd.f32 %v194, %v233
    %v235 = vpop.f32.mrf.mxu0
    %v236 = vadd.f32 %v194, %v235
    %237 = vmatmul.bf16.gmra.mxu0 %v222
    %v238 = vpop.f32.mrf.mxu0
    %v239 = vadd.f32 %v194, %v238
    %v240 = vpop.f32.mrf.mxu0
    %v241 = vadd.f32 %v194, %v240
    %242 = vdwg.mxu0
    %v243 = vld [vmem:[%s4] sm:$0xf]
    %v244 = vld [vmem:[%s4 + $0x4] sm:$0xf]
    %v245 = vld [vmem:[%s4 + $0x8] sm:$0xf]
    %v246 = vld [vmem:[%s4 + $0xc] sm:$0xf]
    %v247 = vpack.c.bf16 %v180, %v180
    %v248 = vpack.c.bf16 %v182, %v182
    %v251 = vunpack.c.l.b16 %v243
    %v252 = vunpack.c.l.b16 %v244
    %v253 = vpack.c.b16 %v252, %v251
    %vm254 = vcmask 64512
    %v256 = vsel %vm254, %v253, 0
    %vm258 = vcmask 1043456
    %v260 = vsel %vm258, %v247, 0
    %262 = vmatpush.bf16.msra.mxu0 0
    %263 = vmatpush.bf16.msra.mxu0 0
    %264 = vmatpush.bf16.msra.mxu0 0
    %265 = vmatpush.bf16.msra.mxu0 0
    %266 = vmatpush.bf16.msra.mxu0 0
    %267 = vmatpush.bf16.msra.mxu0 0
    %268 = vmatpush.bf16.msra.mxu0 0
    %269 = vmatpush.bf16.msra.mxu0 %v260
    %270 = vmatmul.bf16.gmra.mxu0 %v256
    %v271 = vpop.f32.mrf.mxu0
    %v272 = vadd.f32 0.0, %v271
    %v273 = vpop.f32.mrf.mxu0
    %v274 = vadd.f32 0.0, %v273
    %275 = vdwg.mxu0
    %v278 = vunpack.c.l.b16 %v245
    %v279 = vunpack.c.l.b16 %v246
    %v280 = vpack.c.b16 %v279, %v278
    %v282 = vsel %vm254, %v280, 0
    %v285 = vsel %vm258, %v248, 0
    %287 = vmatpush.bf16.msra.mxu0 0
    %288 = vmatpush.bf16.msra.mxu0 0
    %289 = vmatpush.bf16.msra.mxu0 0
    %290 = vmatpush.bf16.msra.mxu0 0
    %291 = vmatpush.bf16.msra.mxu0 0
    %292 = vmatpush.bf16.msra.mxu0 0
    %293 = vmatpush.bf16.msra.mxu0 0
    %294 = vmatpush.bf16.msra.mxu0 %v285
    %295 = vmatmul.bf16.gmra.mxu0 %v282
    %v296 = vpop.f32.mrf.mxu0
    %v297 = vadd.f32 0.0, %v296
    %v298 = vpop.f32.mrf.mxu0
    %v299 = vadd.f32 0.0, %v298
    %300 = vdwg.mxu0
    %v301 = vmul.f32 %v272, %v272
    %v302 = vmul.f32 %v274, %v274
    %v303 = vmul.f32 %v297, %v297
    %v304 = vmul.f32 %v299, %v299
    %v305 = vsel %vm166, %v301, 0.0
    %306 = vadd.xlane.f32.xlu0 %v305
    %v307 = vpop.xlane.xlu0 %306
    %v308 = vsel %vm166, %v302, 0.0
    %309 = vadd.xlane.f32.xlu0 %v308
    %v310 = vpop.xlane.xlu0 %309
    %v311 = vsel %vm166, %v303, 0.0
    %312 = vadd.xlane.f32.xlu0 %v311
    %v313 = vpop.xlane.xlu0 %312
    %v314 = vsel %vm166, %v304, 0.0
    %315 = vadd.xlane.f32.xlu0 %v314
    %v316 = vpop.xlane.xlu0 %315
    %v317 = vadd.f32 %v307, 1e-30
    %v318 = vadd.f32 %v310, 1e-30
    %v319 = vadd.f32 %v313, 1e-30
    %v320 = vadd.f32 %v316, 1e-30
    %v321 = vrsqrt.pop %v317
    %v322 = vmul.f32 %v321, %v317
    %v323 = vmul.f32 %v322, %v321
    %v324 = vmul.f32 0.5, %v323
    %v325 = vsub.f32 1.5, %v324
    %v326 = vmul.f32 %v321, %v325
    %vm327 = vweird.f32 %v317
    %vm328 = vweird.f32 %v321
    %vm329 = vmor %vm327, %vm328
    %v330 = vsel %vm329, %v321, %v326
    %v331 = vrsqrt.pop %v318
    %v332 = vmul.f32 %v331, %v318
    %v333 = vmul.f32 %v332, %v331
    %v334 = vmul.f32 0.5, %v333
    %v335 = vsub.f32 1.5, %v334
    %v336 = vmul.f32 %v331, %v335
    %vm337 = vweird.f32 %v318
    %vm338 = vweird.f32 %v331
    %vm339 = vmor %vm337, %vm338
    %v340 = vsel %vm339, %v331, %v336
    %v341 = vrsqrt.pop %v319
    %v342 = vmul.f32 %v341, %v319
    %v343 = vmul.f32 %v342, %v341
    %v344 = vmul.f32 0.5, %v343
    %v345 = vsub.f32 1.5, %v344
    %v346 = vmul.f32 %v341, %v345
    %vm347 = vweird.f32 %v319
    %vm348 = vweird.f32 %v341
    %vm349 = vmor %vm347, %vm348
    %v350 = vsel %vm349, %v341, %v346
    %v351 = vrsqrt.pop %v320
    %v352 = vmul.f32 %v351, %v320
    %v353 = vmul.f32 %v352, %v351
    %v354 = vmul.f32 0.5, %v353
    %v355 = vsub.f32 1.5, %v354
    %v356 = vmul.f32 %v351, %v355
    %vm357 = vweird.f32 %v320
    %vm358 = vweird.f32 %v351
    %vm359 = vmor %vm357, %vm358
    %v360 = vsel %vm359, %v351, %v356
    %v361 = vmul.f32 %v272, %v330
    %v362 = vmul.f32 %v274, %v340
    %v363 = vmul.f32 %v297, %v350
    %v364 = vmul.f32 %v299, %v360
    %v365 = vld [vmem:[%s5] sm:$0xf]
    %v366 = vld [vmem:[%s5 + $0x4] sm:$0xf]
    %v367 = vld [vmem:[%s5 + $0x8] sm:$0xf]
    %v368 = vld [vmem:[%s5 + $0xc] sm:$0xf]
    %v369 = vpack.c.bf16 %v234, %v234
    %v370 = vpack.c.bf16 %v236, %v236
    %v371 = vpack.c.bf16 %v239, %v239
    %v372 = vpack.c.bf16 %v241, %v241
    %v375 = vunpack.c.l.b16 %v365
    %v376 = vunpack.c.l.b16 %v366
    %v377 = vpack.c.b16 %v376, %v375
    %v380 = vunpack.c.l.b16 %v369
    %v381 = vunpack.c.l.b16 %v370
    %v382 = vpack.c.b16 %v381, %v380
    %vm384 = vcmask 130048
    %v386 = vsel %vm384, %v377, 0
    %388 = vmatpush.bf16.msra.mxu0 0
    %389 = vmatpush.bf16.msra.mxu0 0
    %390 = vmatpush.bf16.msra.mxu0 0
    %391 = vmatpush.bf16.msra.mxu0 0
    %392 = vmatpush.bf16.msra.mxu0 0
    %393 = vmatpush.bf16.msra.mxu0 0
    %394 = vmatpush.bf16.msra.mxu0 0
    %395 = vmatpush.bf16.msra.mxu0 %v382
    %396 = vmatmul.bf16.gmra.mxu0 %v386
    %v397 = vpop.f32.mrf.mxu0
    %v398 = vadd.f32 0.0, %v397
    %v399 = vpop.f32.mrf.mxu0
    %v400 = vadd.f32 0.0, %v399
    %401 = vdwg.mxu0
    %v404 = vunpack.c.l.b16 %v367
    %v405 = vunpack.c.l.b16 %v368
    %v406 = vpack.c.b16 %v405, %v404
    %v409 = vunpack.c.l.b16 %v371
    %v410 = vunpack.c.l.b16 %v372
    %v411 = vpack.c.b16 %v410, %v409
    %v414 = vsel %vm384, %v406, 0
    %416 = vmatpush.bf16.msra.mxu0 0
    %417 = vmatpush.bf16.msra.mxu0 0
    %418 = vmatpush.bf16.msra.mxu0 0
    %419 = vmatpush.bf16.msra.mxu0 0
    %420 = vmatpush.bf16.msra.mxu0 0
    %421 = vmatpush.bf16.msra.mxu0 0
    %422 = vmatpush.bf16.msra.mxu0 0
    %423 = vmatpush.bf16.msra.mxu0 %v411
    %424 = vmatmul.bf16.gmra.mxu0 %v414
    %v425 = vpop.f32.mrf.mxu0
    %v426 = vadd.f32 0.0, %v425
    %v427 = vpop.f32.mrf.mxu0
    %v428 = vadd.f32 0.0, %v427
    %429 = vdwg.mxu0
    %v430 = vunpack.c.l.bf16 %v365
    %v431 = vunpack.c.l.bf16 %v366
    %v432 = vunpack.c.l.bf16 %v367
    %v433 = vunpack.c.l.bf16 %v368
    %vm434 = vcmp.ne.f32.partialorder %v430, 0.0
    %vm435 = vcmp.ne.f32.partialorder %v431, 0.0
    %vm436 = vcmp.ne.f32.partialorder %v432, 0.0
    %vm437 = vcmp.ne.f32.partialorder %v433, 0.0
    %v438 = vsel %vm434, 1, 0
    %v439 = vsel %vm435, 1, 0
    %v440 = vsel %vm436, 1, 0
    %v441 = vsel %vm437, 1, 0
    %v442 = vcvt.s32.f32 %v438
    %v443 = vcvt.s32.f32 %v439
    %v444 = vcvt.s32.f32 %v440
    %v445 = vcvt.s32.f32 %v441
    %v446 = vsel %vm384, %v442, 0.0
    %447 = vadd.xlane.f32.xlu0 %v446
    %v448 = vpop.xlane.xlu0 %447
    %v449 = vsel %vm384, %v443, 0.0
    %450 = vadd.xlane.f32.xlu0 %v449
    %v451 = vpop.xlane.xlu0 %450
    %v452 = vsel %vm384, %v444, 0.0
    %453 = vadd.xlane.f32.xlu0 %v452
    %v454 = vpop.xlane.xlu0 %453
    %v455 = vsel %vm384, %v445, 0.0
    %456 = vadd.xlane.f32.xlu0 %v455
    %v457 = vpop.xlane.xlu0 %456
    %v458 = vadd.f32 %v448, 1e-30
    %v459 = vadd.f32 %v451, 1e-30
    %v460 = vadd.f32 %v454, 1e-30
    %v461 = vadd.f32 %v457, 1e-30
    %v462 = vrcp.pop %v458
    %v463 = vmul.f32 %v458, %v462
    %v464 = vsub.f32 1.0, %v463
    %v465 = vmul.f32 %v462, %v464
    %v466 = vadd.f32 %v462, %v465
    %vm467 = vweird.f32 %v458
    %vm468 = vweird.f32 %v462
    %vm469 = vmor %vm467, %vm468
    %v470 = vsel %vm469, %v462, %v466
    %v471 = vand.u32 2147483647, %v458
    %vm472 = vcmp.eq.f32.partialorder %v471, 8.507059e+37
    %v473 = vand.u32 %v458, 2147483648
    %v474 = vor.u32 1.1754944e-38, %v473
    %v475 = vsel %vm472, %v474, %v470
    %v476 = vmul.f32 1.0, %v475
    %v477 = vrcp.pop %v459
    %v478 = vmul.f32 %v459, %v477
    %v479 = vsub.f32 1.0, %v478
    %v480 = vmul.f32 %v477, %v479
    %v481 = vadd.f32 %v477, %v480
    %vm482 = vweird.f32 %v459
    %vm483 = vweird.f32 %v477
    %vm484 = vmor %vm482, %vm483
    %v485 = vsel %vm484, %v477, %v481
    %v486 = vand.u32 2147483647, %v459
    %vm487 = vcmp.eq.f32.partialorder %v486, 8.507059e+37
    %v488 = vand.u32 %v459, 2147483648
    %v489 = vor.u32 1.1754944e-38, %v488
    %v490 = vsel %vm487, %v489, %v485
    %v491 = vmul.f32 1.0, %v490
    %v492 = vrcp.pop %v460
    %v493 = vmul.f32 %v460, %v492
    %v494 = vsub.f32 1.0, %v493
    %v495 = vmul.f32 %v492, %v494
    %v496 = vadd.f32 %v492, %v495
    %vm497 = vweird.f32 %v460
    %vm498 = vweird.f32 %v492
    %vm499 = vmor %vm497, %vm498
    %v500 = vsel %vm499, %v492, %v496
    %v501 = vand.u32 2147483647, %v460
    %vm502 = vcmp.eq.f32.partialorder %v501, 8.507059e+37
    %v503 = vand.u32 %v460, 2147483648
    %v504 = vor.u32 1.1754944e-38, %v503
    %v505 = vsel %vm502, %v504, %v500
    %v506 = vmul.f32 1.0, %v505
    %v507 = vrcp.pop %v461
    %v508 = vmul.f32 %v461, %v507
    %v509 = vsub.f32 1.0, %v508
    %v510 = vmul.f32 %v507, %v509
    %v511 = vadd.f32 %v507, %v510
    %vm512 = vweird.f32 %v461
    %vm513 = vweird.f32 %v507
    %vm514 = vmor %vm512, %vm513
    %v515 = vsel %vm514, %v507, %v511
    %v516 = vand.u32 2147483647, %v461
    %vm517 = vcmp.eq.f32.partialorder %v516, 8.507059e+37
    %v518 = vand.u32 %v461, 2147483648
    %v519 = vor.u32 1.1754944e-38, %v518
    %v520 = vsel %vm517, %v519, %v515
    %v521 = vmul.f32 1.0, %v520
    %v522 = vmul.f32 %v398, %v476
    %v523 = vmul.f32 %v400, %v491
    %v524 = vmul.f32 %v426, %v506
    %v525 = vmul.f32 %v428, %v521
    %v526 = vmul.f32 %v522, %v522
    %v527 = vmul.f32 %v523, %v523
    %v528 = vmul.f32 %v524, %v524
    %v529 = vmul.f32 %v525, %v525
    %v530 = vsel %vm166, %v526, 0.0
    %531 = vadd.xlane.f32.xlu0 %v530
    %v532 = vpop.xlane.xlu0 %531
    %v533 = vsel %vm166, %v527, 0.0
    %534 = vadd.xlane.f32.xlu0 %v533
    %v535 = vpop.xlane.xlu0 %534
    %v536 = vsel %vm166, %v528, 0.0
    %537 = vadd.xlane.f32.xlu0 %v536
    %v538 = vpop.xlane.xlu0 %537
    %v539 = vsel %vm166, %v529, 0.0
    %540 = vadd.xlane.f32.xlu0 %v539
    %v541 = vpop.xlane.xlu0 %540
    %v542 = vadd.f32 %v532, 1e-30
    %v543 = vadd.f32 %v535, 1e-30
    %v544 = vadd.f32 %v538, 1e-30
    %v545 = vadd.f32 %v541, 1e-30
    %v546 = vrsqrt.pop %v542
    %v547 = vmul.f32 %v546, %v542
    %v548 = vmul.f32 %v547, %v546
    %v549 = vmul.f32 0.5, %v548
    %v550 = vsub.f32 1.5, %v549
    %v551 = vmul.f32 %v546, %v550
    %vm552 = vweird.f32 %v542
    %vm553 = vweird.f32 %v546
    %vm554 = vmor %vm552, %vm553
    %v555 = vsel %vm554, %v546, %v551
    %v556 = vrsqrt.pop %v543
    %v557 = vmul.f32 %v556, %v543
    %v558 = vmul.f32 %v557, %v556
    %v559 = vmul.f32 0.5, %v558
    %v560 = vsub.f32 1.5, %v559
    %v561 = vmul.f32 %v556, %v560
    %vm562 = vweird.f32 %v543
    %vm563 = vweird.f32 %v556
    %vm564 = vmor %vm562, %vm563
    %v565 = vsel %vm564, %v556, %v561
    %v566 = vrsqrt.pop %v544
    %v567 = vmul.f32 %v566, %v544
    %v568 = vmul.f32 %v567, %v566
    %v569 = vmul.f32 0.5, %v568
    %v570 = vsub.f32 1.5, %v569
    %v571 = vmul.f32 %v566, %v570
    %vm572 = vweird.f32 %v544
    %vm573 = vweird.f32 %v566
    %vm574 = vmor %vm572, %vm573
    %v575 = vsel %vm574, %v566, %v571
    %v576 = vrsqrt.pop %v545
    %v577 = vmul.f32 %v576, %v545
    %v578 = vmul.f32 %v577, %v576
    %v579 = vmul.f32 0.5, %v578
    %v580 = vsub.f32 1.5, %v579
    %v581 = vmul.f32 %v576, %v580
    %vm582 = vweird.f32 %v545
    %vm583 = vweird.f32 %v576
    %vm584 = vmor %vm582, %vm583
    %v585 = vsel %vm584, %v576, %v581
    %v586 = vmul.f32 %v522, %v555
    %v587 = vmul.f32 %v523, %v565
    %v588 = vmul.f32 %v524, %v575
    %v589 = vmul.f32 %v525, %v585
    %v590 = vld [vmem:[%s6] sm:$0xf]
    %v591 = vld [vmem:[%s6 + $0x4] sm:$0xf]
    %v592 = vld [vmem:[%s6 + $0x8] sm:$0xf]
    %v593 = vld [vmem:[%s6 + $0xc] sm:$0xf]
    %v596 = vunpack.c.l.b16 %v590
    %v597 = vunpack.c.l.b16 %v591
    %v598 = vpack.c.b16 %v597, %v596
    %599 = vrot.lane.b32.xlu0 %v382, 96
    %v600 = vpop.permute.xlu0 %599
    %v603 = vsel %vm384, %v598, 0
    %605 = vmatpush.bf16.msra.mxu0 0
    %606 = vmatpush.bf16.msra.mxu0 0
    %607 = vmatpush.bf16.msra.mxu0 0
    %608 = vmatpush.bf16.msra.mxu0 0
    %609 = vmatpush.bf16.msra.mxu0 0
    %610 = vmatpush.bf16.msra.mxu0 0
    %611 = vmatpush.bf16.msra.mxu0 0
    %612 = vmatpush.bf16.msra.mxu0 %v600
    %613 = vmatmul.bf16.gmra.mxu0 %v603
    %v614 = vpop.f32.mrf.mxu0
    %v615 = vadd.f32 0.0, %v614
    %v616 = vpop.f32.mrf.mxu0
    %v617 = vadd.f32 0.0, %v616
    %618 = vdwg.mxu0
    %v621 = vunpack.c.l.b16 %v592
    %v622 = vunpack.c.l.b16 %v593
    %v623 = vpack.c.b16 %v622, %v621
    %624 = vrot.lane.b32.xlu0 %v411, 96
    %v625 = vpop.permute.xlu0 %624
    %v628 = vsel %vm384, %v623, 0
    %630 = vmatpush.bf16.msra.mxu0 0
    %631 = vmatpush.bf16.msra.mxu0 0
    %632 = vmatpush.bf16.msra.mxu0 0
    %633 = vmatpush.bf16.msra.mxu0 0
    %634 = vmatpush.bf16.msra.mxu0 0
    %635 = vmatpush.bf16.msra.mxu0 0
    %636 = vmatpush.bf16.msra.mxu0 0
    %637 = vmatpush.bf16.msra.mxu0 %v625
    %638 = vmatmul.bf16.gmra.mxu0 %v628
    %v639 = vpop.f32.mrf.mxu0
    %v640 = vadd.f32 0.0, %v639
    %v641 = vpop.f32.mrf.mxu0
    %v642 = vadd.f32 0.0, %v641
    %643 = vdwg.mxu0
    %v644 = vunpack.c.l.bf16 %v590
    %v645 = vunpack.c.l.bf16 %v591
    %v646 = vunpack.c.l.bf16 %v592
    %v647 = vunpack.c.l.bf16 %v593
    %vm648 = vcmp.ne.f32.partialorder %v644, 0.0
    %vm649 = vcmp.ne.f32.partialorder %v645, 0.0
    %vm650 = vcmp.ne.f32.partialorder %v646, 0.0
    %vm651 = vcmp.ne.f32.partialorder %v647, 0.0
    %v652 = vsel %vm648, 1, 0
    %v653 = vsel %vm649, 1, 0
    %v654 = vsel %vm650, 1, 0
    %v655 = vsel %vm651, 1, 0
    %v656 = vcvt.s32.f32 %v652
    %v657 = vcvt.s32.f32 %v653
    %v658 = vcvt.s32.f32 %v654
    %v659 = vcvt.s32.f32 %v655
    %v660 = vsel %vm384, %v656, 0.0
    %661 = vadd.xlane.f32.xlu0 %v660
    %v662 = vpop.xlane.xlu0 %661
    %v663 = vsel %vm384, %v657, 0.0
    %664 = vadd.xlane.f32.xlu0 %v663
    %v665 = vpop.xlane.xlu0 %664
    %v666 = vsel %vm384, %v658, 0.0
    %667 = vadd.xlane.f32.xlu0 %v666
    %v668 = vpop.xlane.xlu0 %667
    %v669 = vsel %vm384, %v659, 0.0
    %670 = vadd.xlane.f32.xlu0 %v669
    %v671 = vpop.xlane.xlu0 %670
    %v672 = vadd.f32 %v662, 1e-30
    %v673 = vadd.f32 %v665, 1e-30
    %v674 = vadd.f32 %v668, 1e-30
    %v675 = vadd.f32 %v671, 1e-30
    %v676 = vrcp.pop %v672
    %v677 = vmul.f32 %v672, %v676
    %v678 = vsub.f32 1.0, %v677
    %v679 = vmul.f32 %v676, %v678
    %v680 = vadd.f32 %v676, %v679
    %vm681 = vweird.f32 %v672
    %vm682 = vweird.f32 %v676
    %vm683 = vmor %vm681, %vm682
    %v684 = vsel %vm683, %v676, %v680
    %v685 = vand.u32 2147483647, %v672
    %vm686 = vcmp.eq.f32.partialorder %v685, 8.507059e+37
    %v687 = vand.u32 %v672, 2147483648
    %v688 = vor.u32 1.1754944e-38, %v687
    %v689 = vsel %vm686, %v688, %v684
    %v690 = vmul.f32 1.0, %v689
    %v691 = vrcp.pop %v673
    %v692 = vmul.f32 %v673, %v691
    %v693 = vsub.f32 1.0, %v692
    %v694 = vmul.f32 %v691, %v693
    %v695 = vadd.f32 %v691, %v694
    %vm696 = vweird.f32 %v673
    %vm697 = vweird.f32 %v691
    %vm698 = vmor %vm696, %vm697
    %v699 = vsel %vm698, %v691, %v695
    %v700 = vand.u32 2147483647, %v673
    %vm701 = vcmp.eq.f32.partialorder %v700, 8.507059e+37
    %v702 = vand.u32 %v673, 2147483648
    %v703 = vor.u32 1.1754944e-38, %v702
    %v704 = vsel %vm701, %v703, %v699
    %v705 = vmul.f32 1.0, %v704
    %v706 = vrcp.pop %v674
    %v707 = vmul.f32 %v674, %v706
    %v708 = vsub.f32 1.0, %v707
    %v709 = vmul.f32 %v706, %v708
    %v710 = vadd.f32 %v706, %v709
    %vm711 = vweird.f32 %v674
    %vm712 = vweird.f32 %v706
    %vm713 = vmor %vm711, %vm712
    %v714 = vsel %vm713, %v706, %v710
    %v715 = vand.u32 2147483647, %v674
    %vm716 = vcmp.eq.f32.partialorder %v715, 8.507059e+37
    %v717 = vand.u32 %v674, 2147483648
    %v718 = vor.u32 1.1754944e-38, %v717
    %v719 = vsel %vm716, %v718, %v714
    %v720 = vmul.f32 1.0, %v719
    %v721 = vrcp.pop %v675
    %v722 = vmul.f32 %v675, %v721
    %v723 = vsub.f32 1.0, %v722
    %v724 = vmul.f32 %v721, %v723
    %v725 = vadd.f32 %v721, %v724
    %vm726 = vweird.f32 %v675
    %vm727 = vweird.f32 %v721
    %vm728 = vmor %vm726, %vm727
    %v729 = vsel %vm728, %v721, %v725
    %v730 = vand.u32 2147483647, %v675
    %vm731 = vcmp.eq.f32.partialorder %v730, 8.507059e+37
    %v732 = vand.u32 %v675, 2147483648
    %v733 = vor.u32 1.1754944e-38, %v732
    %v734 = vsel %vm731, %v733, %v729
    %v735 = vmul.f32 1.0, %v734
    %v736 = vmul.f32 %v615, %v690
    %v737 = vmul.f32 %v617, %v705
    %v738 = vmul.f32 %v640, %v720
    %v739 = vmul.f32 %v642, %v735
    %v740 = vmul.f32 %v736, %v736
    %v741 = vmul.f32 %v737, %v737
    %v742 = vmul.f32 %v738, %v738
    %v743 = vmul.f32 %v739, %v739
    %v744 = vsel %vm166, %v740, 0.0
    %745 = vadd.xlane.f32.xlu0 %v744
    %v746 = vpop.xlane.xlu0 %745
    %v747 = vsel %vm166, %v741, 0.0
    %748 = vadd.xlane.f32.xlu0 %v747
    %v749 = vpop.xlane.xlu0 %748
    %v750 = vsel %vm166, %v742, 0.0
    %751 = vadd.xlane.f32.xlu0 %v750
    %v752 = vpop.xlane.xlu0 %751
    %v753 = vsel %vm166, %v743, 0.0
    %754 = vadd.xlane.f32.xlu0 %v753
    %v755 = vpop.xlane.xlu0 %754
    %v756 = vadd.f32 %v746, 1e-30
    %v757 = vadd.f32 %v749, 1e-30
    %v758 = vadd.f32 %v752, 1e-30
    %v759 = vadd.f32 %v755, 1e-30
    %v760 = vrsqrt.pop %v756
    %v761 = vmul.f32 %v760, %v756
    %v762 = vmul.f32 %v761, %v760
    %v763 = vmul.f32 0.5, %v762
    %v764 = vsub.f32 1.5, %v763
    %v765 = vmul.f32 %v760, %v764
    %vm766 = vweird.f32 %v756
    %vm767 = vweird.f32 %v760
    %vm768 = vmor %vm766, %vm767
    %v769 = vsel %vm768, %v760, %v765
    %v770 = vrsqrt.pop %v757
    %v771 = vmul.f32 %v770, %v757
    %v772 = vmul.f32 %v771, %v770
    %v773 = vmul.f32 0.5, %v772
    %v774 = vsub.f32 1.5, %v773
    %v775 = vmul.f32 %v770, %v774
    %vm776 = vweird.f32 %v757
    %vm777 = vweird.f32 %v770
    %vm778 = vmor %vm776, %vm777
    %v779 = vsel %vm778, %v770, %v775
    %v780 = vrsqrt.pop %v758
    %v781 = vmul.f32 %v780, %v758
    %v782 = vmul.f32 %v781, %v780
    %v783 = vmul.f32 0.5, %v782
    %v784 = vsub.f32 1.5, %v783
    %v785 = vmul.f32 %v780, %v784
    %vm786 = vweird.f32 %v758
    %vm787 = vweird.f32 %v780
    %vm788 = vmor %vm786, %vm787
    %v789 = vsel %vm788, %v780, %v785
    %v790 = vrsqrt.pop %v759
    %v791 = vmul.f32 %v790, %v759
    %v792 = vmul.f32 %v791, %v790
    %v793 = vmul.f32 0.5, %v792
    %v794 = vsub.f32 1.5, %v793
    %v795 = vmul.f32 %v790, %v794
    %vm796 = vweird.f32 %v759
    %vm797 = vweird.f32 %v790
    %vm798 = vmor %vm796, %vm797
    %v799 = vsel %vm798, %v790, %v795
    %v800 = vmul.f32 %v736, %v769
    %v801 = vmul.f32 %v737, %v779
    %v802 = vmul.f32 %v738, %v789
    %v803 = vmul.f32 %v739, %v799
    %808 = vrot.lane.b32.xlu0 %v586, 32
    %v809 = vpop.permute.xlu0 %808
    %810 = vrot.lane.b32.xlu0 %v587, 32
    %v811 = vpop.permute.xlu0 %810
    %812 = vrot.lane.b32.xlu0 %v588, 32
    %v813 = vpop.permute.xlu0 %812
    %814 = vrot.lane.b32.xlu0 %v589, 32
    %v815 = vpop.permute.xlu0 %814
    %824 = vrot.lane.b32.xlu0 %v800, 64
    %v825 = vpop.permute.xlu0 %824
    %826 = vrot.lane.b32.xlu0 %v801, 64
    %v827 = vpop.permute.xlu0 %826
    %828 = vrot.lane.b32.xlu0 %v802, 64
    %v829 = vpop.permute.xlu0 %828
    %830 = vrot.lane.b32.xlu0 %v803, 64
    %v831 = vpop.permute.xlu0 %830
    %v836 = vsel %vm166, %v361, %v809
    %v837 = vsel %vm166, %v362, %v811
    %v838 = vsel %vm166, %v363, %v813
    %v839 = vsel %vm166, %v364, %v815
    %vm840 = vcmask 523264
    %v841 = vsel %vm840, %v836, %v825
    %v842 = vsel %vm840, %v837, %v827
    %v843 = vsel %vm840, %v838, %v829
    %v844 = vsel %vm840, %v839, %v831
    %v845 = vpack.c.bf16 %v841, %v841
    %v846 = vpack.c.bf16 %v842, %v842
    %v847 = vpack.c.bf16 %v843, %v843
    %v848 = vpack.c.bf16 %v844, %v844
    %v849 = vld [vmem:[%s12] sm:$0xf]
    %v850 = vld [vmem:[%s12 + $0x4] sm:$0xf]
    %v851 = vld [vmem:[%s12 + $0x8] sm:$0xf]
    %v852 = vld [vmem:[%s12 + $0xc] sm:$0xf]
    %v853 = vld [vmem:[%s12 + $0x10] sm:$0xf]
    %v854 = vld [vmem:[%s12 + $0x14] sm:$0xf]
    %v855 = vld [vmem:[%s12 + $0x18] sm:$0xf]
    %v856 = vld [vmem:[%s12 + $0x1c] sm:$0xf]
    %v857 = vld [vmem:[%s12 + $0x20] sm:$0xf]
    %v858 = vld [vmem:[%s12 + $0x24] sm:$0xf]
    %v859 = vld [vmem:[%s12 + $0x28] sm:$0xf]
    %v860 = vld [vmem:[%s12 + $0x2c] sm:$0xf]
    %v861 = vld [vmem:[%s13] sm:$0x1]
    %v863 = vperm.slane %v861, 0
    %v869 = vunpack.c.l.b16 %v845
    %v870 = vunpack.c.l.b16 %v846
    %v871 = vunpack.c.l.b16 %v847
    %v872 = vunpack.c.l.b16 %v848
    %v873 = vpack.c.b16 %v870, %v869
    %v874 = vpack.c.b16 %v872, %v871
    %v887 = vunpack.c.l.b16 %v849
    %v888 = vunpack.c.l.b16 %v850
    %v889 = vunpack.c.l.b16 %v851
    %v890 = vunpack.c.l.b16 %v852
    %v891 = vunpack.c.l.b16 %v853
    %v892 = vunpack.c.l.b16 %v854
    %v893 = vunpack.c.l.b16 %v855
    %v894 = vunpack.c.l.b16 %v856
    %v895 = vunpack.c.l.b16 %v857
    %v896 = vunpack.c.l.b16 %v858
    %v897 = vunpack.c.l.b16 %v859
    %v898 = vunpack.c.l.b16 %v860
    %v899 = vpack.c.b16 %v888, %v887
    %v900 = vpack.c.b16 %v890, %v889
    %v901 = vpack.c.b16 %v892, %v891
    %v902 = vpack.c.b16 %v894, %v893
    %v903 = vpack.c.b16 %v896, %v895
    %v904 = vpack.c.b16 %v898, %v897
    %vm911 = vcmask 785408
    %v913 = vsel %vm911, %v873, 0
    %v916 = vsel %vm911, %v874, 0
    %918 = vmatpush.bf16.msra.mxu0 0
    %919 = vmatpush.bf16.msra.mxu0 0
    %920 = vmatpush.bf16.msra.mxu0 %v904
    %921 = vmatpush.bf16.msra.mxu0 %v903
    %922 = vmatpush.bf16.msra.mxu0 %v902
    %923 = vmatpush.bf16.msra.mxu0 %v901
    %924 = vmatpush.bf16.msra.mxu0 %v900
    %925 = vmatpush.bf16.msra.mxu0 %v899
    %926 = vmatmul.bf16.gmra.mxu0 %v913
    %v927 = vpop.f32.mrf.mxu0
    %v928 = vadd.f32 %v863, %v927
    %v929 = vpop.f32.mrf.mxu0
    %v930 = vadd.f32 %v863, %v929
    %931 = vmatmul.bf16.gmra.mxu0 %v916
    %v932 = vpop.f32.mrf.mxu0
    %v933 = vadd.f32 %v863, %v932
    %v934 = vpop.f32.mrf.mxu0
    %v935 = vadd.f32 %v863, %v934
    %936 = vdwg.mxu0
    %v937 = vmax.f32 %v928, 0.0
    %v938 = vmax.f32 %v930, 0.0
    %v939 = vmax.f32 %v933, 0.0
    %v940 = vmax.f32 %v935, 0.0
    %v941 = vld [vmem:[#allocation8] sm:$0x1]
    %v942 = vld [vmem:[#allocation8 + $0x1] sm:$0x1]
    %vm943 = vcmp.ne.f32.partialorder %v941, 0.0
    %vm944 = vcmp.ne.f32.partialorder %v942, 0.0
    %v945 = vsel %vm943, 1, 0
    %v946 = vsel %vm944, 1, 0
    %v947 = vcvt.s32.f32 %v945
    %v948 = vcvt.s32.f32 %v946
    %vm949 = vcmask 122880
    %v950 = vsel %vm949, %v947, 0.0
    %951 = vadd.xlane.f32.xlu0 %v950
    %v952 = vpop.xlane.xlu0 %951
    %v953 = vsel %vm949, %v948, 0.0
    %954 = vadd.xlane.f32.xlu0 %v953
    %v955 = vpop.xlane.xlu0 %954
    %v957 = vsel %vm384, %v941, 0
    %959 = vmatpush.msra.mxu0 0.0
    %960 = vmatpush.msra.mxu0 0.0
    %961 = vmatpush.msra.mxu0 0.0
    %962 = vmatpush.msra.mxu0 0.0
    %963 = vmatpush.msra.mxu0 0.0
    %964 = vmatpush.msra.mxu0 0.0
    %965 = vmatpush.msra.mxu0 0.0
    %966 = vmatpush.msra.mxu0 0.0
    %967 = vmatpush.msra.mxu0 0.0
    %968 = vmatpush.msra.mxu0 0.0
    %969 = vmatpush.msra.mxu0 0.0
    %970 = vmatpush.msra.mxu0 0.0
    %971 = vmatpush.msra.mxu0 0.0
    %972 = vmatpush.msra.mxu0 0.0
    %973 = vmatpush.msra.mxu0 %v938
    %974 = vmatpush.msra.mxu0 %v937
    %975 = vmatmul.f32.gmra.mxu0 %v957
    %v976 = vpop.f32.mrf.mxu0
    %v977 = vadd.f32 0.0, %v976
    %978 = vdwg.mxu0
    %v980 = vsel %vm384, %v942, 0
    %982 = vmatpush.msra.mxu0 0.0
    %983 = vmatpush.msra.mxu0 0.0
    %984 = vmatpush.msra.mxu0 0.0
    %985 = vmatpush.msra.mxu0 0.0
    %986 = vmatpush.msra.mxu0 0.0
    %987 = vmatpush.msra.mxu0 0.0
    %988 = vmatpush.msra.mxu0 0.0
    %989 = vmatpush.msra.mxu0 0.0
    %990 = vmatpush.msra.mxu0 0.0
    %991 = vmatpush.msra.mxu0 0.0
    %992 = vmatpush.msra.mxu0 0.0
    %993 = vmatpush.msra.mxu0 0.0
    %994 = vmatpush.msra.mxu0 0.0
    %995 = vmatpush.msra.mxu0 0.0
    %996 = vmatpush.msra.mxu0 %v940
    %997 = vmatpush.msra.mxu0 %v939
    %998 = vmatmul.f32.gmra.mxu0 %v980
    %v999 = vpop.f32.mrf.mxu0
    %v1000 = vadd.f32 0.0, %v999
    %1001 = vdwg.mxu0
    %v1002 = vadd.f32 %v952, 1e-30
    %v1003 = vadd.f32 %v955, 1e-30
    %v1004 = vrcp.pop %v1002
    %v1005 = vmul.f32 %v1002, %v1004
    %v1006 = vsub.f32 1.0, %v1005
    %v1007 = vmul.f32 %v1004, %v1006
    %v1008 = vadd.f32 %v1004, %v1007
    %vm1009 = vweird.f32 %v1002
    %vm1010 = vweird.f32 %v1004
    %vm1011 = vmor %vm1009, %vm1010
    %v1012 = vsel %vm1011, %v1004, %v1008
    %v1013 = vand.u32 2147483647, %v1002
    %vm1014 = vcmp.eq.f32.partialorder %v1013, 8.507059e+37
    %v1015 = vand.u32 %v1002, 2147483648
    %v1016 = vor.u32 1.1754944e-38, %v1015
    %v1017 = vsel %vm1014, %v1016, %v1012
    %v1018 = vmul.f32 1.0, %v1017
    %v1019 = vrcp.pop %v1003
    %v1020 = vmul.f32 %v1003, %v1019
    %v1021 = vsub.f32 1.0, %v1020
    %v1022 = vmul.f32 %v1019, %v1021
    %v1023 = vadd.f32 %v1019, %v1022
    %vm1024 = vweird.f32 %v1003
    %vm1025 = vweird.f32 %v1019
    %vm1026 = vmor %vm1024, %vm1025
    %v1027 = vsel %vm1026, %v1019, %v1023
    %v1028 = vand.u32 2147483647, %v1003
    %vm1029 = vcmp.eq.f32.partialorder %v1028, 8.507059e+37
    %v1030 = vand.u32 %v1003, 2147483648
    %v1031 = vor.u32 1.1754944e-38, %v1030
    %v1032 = vsel %vm1029, %v1031, %v1027
    %v1033 = vmul.f32 1.0, %v1032
    %v1034 = vperm.slane %v1018, 0
    %v1035 = vperm.slane %v1033, 0
    %v1036 = vmul.f32 %v977, %v1034
    %v1037 = vmul.f32 %v1000, %v1035
    %v1038 = vpack.c.bf16 %v1036, %v1036
    %v1039 = vpack.c.bf16 %v1037, %v1037
    %v1040 = vld [vmem:[#allocation9] sm:$0xf]
    %v1041 = vld [vmem:[#allocation9 + $0x4] sm:$0xf]
    %v1042 = vld [vmem:[#allocation9 + $0x8] sm:$0xf]
    %v1043 = vld [vmem:[#allocation9 + $0xc] sm:$0xf]
    %v1046 = vunpack.c.l.b16 %v1038
    %v1047 = vunpack.c.l.b16 %v1039
    %v1048 = vrot.slane %v1047, 7
    %vm1049 = vcmask 1041409
    %v1050 = vsel %vm1049, %v1048, %v1046
    %v1051 = vpack.c.b16 %v1050, %v1050
    %v1056 = vunpack.c.l.b16 %v1040
    %v1057 = vunpack.c.l.b16 %v1041
    %v1058 = vunpack.c.l.b16 %v1042
    %v1059 = vunpack.c.l.b16 %v1043
    %v1060 = vpack.c.b16 %v1057, %v1056
    %v1061 = vpack.c.b16 %v1059, %v1058
    %v1065 = vsel %vm166, %v1051, 0
    %1067 = vmatpush.bf16.msra.mxu0 0
    %1068 = vmatpush.bf16.msra.mxu0 0
    %1069 = vmatpush.bf16.msra.mxu0 0
    %1070 = vmatpush.bf16.msra.mxu0 0
    %1071 = vmatpush.bf16.msra.mxu0 0
    %1072 = vmatpush.bf16.msra.mxu0 0
    %1073 = vmatpush.bf16.msra.mxu0 %v1061
    %1074 = vmatpush.bf16.msra.mxu0 %v1060
    %1075 = vmatmul.bf16.gmra.mxu0 %v1065
    %v1076 = vpop.f32.mrf.mxu0
    %v1077 = vadd.f32 0.0, %v1076
    %v1078 = vpop.f32.mrf.mxu0
    %1079 = vdwg.mxu0
    %v1080 = vld [vmem:[%s15] sm:$0x1]
    %v1082 = vperm.slane %v1080, 0
    %v1084 = vadd.f32 %v1077, %v1082
    %v1085 = vmax.f32 %v1084, 0.0
    %v1086 = vld [vmem:[#allocation6] sm:$0x3]
    %v1087 = vld [vmem:[%s17] sm:$0x1]
    %v1089 = vperm.slane %v1087, 0
    %1090 = vrot.lane.b32.xlu0 %v1089, 32
    %v1091 = vpop.permute.xlu0 %1090
    %v1093 = vadd.f32 %v1077, %v1091
    %v1094 = vpack.c.bf16 %v1086, %v1086
    %v1095 = vld [vmem:[#allocation11] sm:$0xf]
    %v1096 = vld [vmem:[#allocation11 + $0x4] sm:$0xf]
    %v1097 = vld [vmem:[#allocation11 + $0x8] sm:$0xf]
    %v1098 = vld [vmem:[#allocation11 + $0xc] sm:$0xf]
    %v1103 = vunpack.c.l.b16 %v1095
    %v1104 = vunpack.c.l.b16 %v1096
    %v1105 = vunpack.c.l.b16 %v1097
    %v1106 = vunpack.c.l.b16 %v1098
    %v1107 = vpack.c.b16 %v1104, %v1103
    %v1108 = vpack.c.b16 %v1106, %v1105
    %v1112 = vsel %vm166, %v1094, 0
    %1114 = vmatpush.bf16.msra.mxu0 0
    %1115 = vmatpush.bf16.msra.mxu0 0
    %1116 = vmatpush.bf16.msra.mxu0 0
    %1117 = vmatpush.bf16.msra.mxu0 0
    %1118 = vmatpush.bf16.msra.mxu0 0
    %1119 = vmatpush.bf16.msra.mxu0 0
    %1120 = vmatpush.bf16.msra.mxu0 %v1108
    %1121 = vmatpush.bf16.msra.mxu0 %v1107
    %1122 = vmatmul.bf16.gmra.mxu0 %v1112
    %v1123 = vpop.f32.mrf.mxu0
    %v1124 = vadd.f32 0.0, %v1123
    %v1125 = vpop.f32.mrf.mxu0
    %1126 = vdwg.mxu0
    %1128 = vrot.lane.b32.xlu0 %v1124, 32
    %v1129 = vpop.permute.xlu0 %1128
    %v1131 = vadd.f32 %v1093, %v1129
    %v1132 = vxor.u32 %v1131, 2147483648
    %v1133 = vmul.f32 %v1132, 1.442695
    %v1134 = vpow.pop %v1133
    %v1135 = vadd.f32 %v1134, 1.0
    %v1136 = vrcp.pop %v1135
    %v1137 = vmul.f32 %v1135, %v1136
    %v1138 = vsub.f32 1.0, %v1137
    %v1139 = vmul.f32 %v1136, %v1138
    %v1140 = vadd.f32 %v1136, %v1139
    %vm1141 = vweird.f32 %v1135
    %vm1142 = vweird.f32 %v1136
    %vm1143 = vmor %vm1141, %vm1142
    %v1144 = vsel %vm1143, %v1136, %v1140
    %v1145 = vand.u32 2147483647, %v1135
    %vm1146 = vcmp.eq.f32.partialorder %v1145, 8.507059e+37
    %v1147 = vand.u32 %v1135, 2147483648
    %v1148 = vor.u32 1.1754944e-38, %v1147
    %v1149 = vsel %vm1146, %v1148, %v1144
    %v1150 = vmul.f32 1.0, %v1149
    %v1151 = vstv %s138
    %v1152 = vmax.f32 %v1150, %v1151
    %1154 = vrot.lane.b32.xlu0 %v1086, 32
    %v1155 = vpop.permute.xlu0 %1154
    %v1157 = vmul.f32 %v1152, %v1155
    %v1158 = vsub.f32 1.0, %v1150
    %1160 = vrot.lane.b32.xlu0 %v1085, 32
    %v1161 = vpop.permute.xlu0 %1160
    %v1163 = vmul.f32 %v1158, %v1161
    %v1164 = vadd.f32 %v1157, %v1163
    %1166 = vrot.lane.b32.xlu0 %v1164, 96
    %v1167 = vpop.permute.xlu0 %1166
    %vm1169 = vcmask 254976
    %1170 = vst.msk [vmem:[#allocation12] sm:$0x3] %vm1169, %v1167
    // Predicated region
    $region94: #{tpu_custom_call.1} parent=1 // pred_check
      _
    $region95: #{tpu_custom_call.1} parent=1 // pred_check_branch
      %1172 = sbr.rel (0) target = $region97
    $region96: #{tpu_custom_call.1} parent=1 // pred_region
      %1174 = vsyncadd [#allocation5], 0
      %s1176 = sshll.u32 [#allocation12], 4
      %s1177 = int_to_ptr.vmem [resolvable:$true] %s1176
      %s1178 = sshll.u32 %s18, 4
      %s1179 = int_to_ptr.hbm [resolvable:$true] %s1178
      %1181 = dma.vmem_to_hbm [thread:$0]  %s1177, 32, %s1179, [#allocation5]
    $region97: #{tpu_custom_call.1} parent=1 // pred_fallthru
      _
    // Predicated region
    $region98: #{tpu_custom_call.1} parent=1 // pred_check
      _
    $region99: #{tpu_custom_call.1} parent=1 // pred_check_branch
      %1183 = sbr.rel (0) target = $region101
    $region100: #{tpu_custom_call.1} parent=1 // pred_region
      %1185 = dma.done [#allocation5], 32
    $region101: #{tpu_custom_call.1} parent=1 // pred_fallthru
      _
    %1186 = vsyncpa [#allocation4], 1
    %1187 = vsyncpa [#allocation7], 1
    %1188 = vsyncpa [#allocation10], 1
    %1189 = vsyncpa [#allocation5], 1

</llo_original>
